<compile_context>
chip_gen: v7x
topology: tpu7x:2x2x1
jax: 0.10.0
libtpu: 0.0.40
codegen_flags: <defaults>
</compile_context>

<pallas_src>
import functools

import numpy as np
import jax
import jax.numpy as jnp
from jax.experimental import pallas as pl
from jax.experimental.pallas import tpu as pltpu


# Lane-friendly padded widths (multiples of 128 on the lane axis).
IN_PAD = 128   # padded (state + action-parameter) width for layer 1
H_PAD = 128    # padded hidden width (both hidden layers)
A_PAD = 128    # padded output width (>= action_size), lane-dense output slab


# --------------------------------------------------------------------------
# Fused kernel: build multipass input in VMEM, 3 matmuls (one weight load per
# layer), fused diagonal extraction, lane-dense (B, 128) output.
# --------------------------------------------------------------------------
def fused_multipass_kernel(state_ref, ap_ref, w1_ref, b1_ref, w2_ref, b2_ref,
                           w3_ref, b3_ref, out_ref, x_scr,
                           *, action_size, batch, state_size, offsets):
    A, B, S = action_size, batch, state_size
    N = out_ref.shape[1]                          # A_PAD (lane-dense)

    # ---- Build the (A*B, IN_PAD) multipass layer-1 input in VMEM ----------
    # Zero everything (tail lanes must be 0; NaN garbage * 0-weight != 0),
    # then copy state into lanes [0:S) for every pass and ONLY pass a's own
    # action-parameter slice into lanes [S+off_a : S+off_{a+1}).
    x_scr[...] = jnp.zeros_like(x_scr)
    state = state_ref[...]                        # (B, S)   unpadded
    ap = ap_ref[...]                              # (B, P)   unpadded
    for a in range(A):                            # static unroll, A is small
        lo, hi = offsets[a], offsets[a + 1]
        x_scr[a * B:(a + 1) * B, 0:S] = state
        if hi > lo:
            x_scr[a * B:(a + 1) * B, S + lo:S + hi] = ap[:, lo:hi]

    x = x_scr[...]                                # (A*B, IN_PAD)

    # ---- 3-layer MLP: exactly one MXU weight load per layer ---------------
    h = jnp.maximum(
        jnp.dot(x, w1_ref[...], preferred_element_type=jnp.float32)
        + b1_ref[...], 0.0)                       # (A*B, H_PAD)
    h = jnp.maximum(
        jnp.dot(h, w2_ref[...], preferred_element_type=jnp.float32)
        + b2_ref[...], 0.0)                       # (A*B, H_PAD)
    q_all = jnp.dot(h, w3_ref[...],
                    preferred_element_type=jnp.float32)   # (A*B, A_PAD)

    # ---- Fused diagonal extraction: out[b, a] = q_all[a*B + b, a] ----------
    # Select-merge per pass (no extra adds); output bias added once at the end.
    lane = jax.lax.broadcasted_iota(jnp.int32, (B, N), 1)
    acc = jnp.zeros((B, N), jnp.float32)
    for a in range(A):
        acc = jnp.where(lane == a, q_all[a * B:(a + 1) * B, :], acc)
    out_ref[...] = acc + b3_ref[...]              # padded b3 columns are zero


# --------------------------------------------------------------------------
# Wrapper: no per-call activation padding; optional batch-tiled parallel grid.
# --------------------------------------------------------------------------
def multipass_q_actor_forward(state, action_parameters, kparams,
                              state_size, action_size, offsets,
                              *, batch_tile=None):
    """
    state:              (B, S) float32
    action_parameters:  (B, P) float32, P = sum(action_parameter_size_list)
    returns Q:          (B, A) float32
    """
    B, S = state.shape
    P = action_parameters.shape[1]
    A = action_size
    offsets = tuple(int(o) for o in offsets)

    # Sublane-aligned batch for clean codegen (no-op for B % 8 == 0).
    b_pad = -(-B // 8) * 8
    if b_pad != B:
        state = jnp.pad(state, ((0, b_pad - B), (0, 0)))
        action_parameters = jnp.pad(action_parameters,
                                    ((0, b_pad - B), (0, 0)))

    if batch_tile is None or batch_tile >= b_pad:
        tb, grid = b_pad, None                    # gridless: best for small B
    else:
        assert b_pad % batch_tile == 0 and batch_tile % 8 == 0
        tb, grid = batch_tile, (b_pad // batch_tile,)

    kern = functools.partial(fused_multipass_kernel, action_size=A, batch=tb,
                             state_size=S, offsets=offsets)

    weights = (kparams["w1"], kparams["b1"], kparams["w2"], kparams["b2"],
               kparams["w3"], kparams["b3"])
    operands = (state, action_parameters) + weights

    flops = 2 * A * b_pad * (IN_PAD * H_PAD + H_PAD * H_PAD + H_PAD * A_PAD)
    bytes_accessed = 4 * (state.size + action_parameters.size
                          + sum(int(w.size) for w in weights)
                          + b_pad * A_PAD)
    cost = pl.CostEstimate(flops=flops, transcendentals=0,
                           bytes_accessed=bytes_accessed)
    scratch = [pltpu.VMEM((A * tb, IN_PAD), jnp.float32)]
    out_shape = jax.ShapeDtypeStruct((b_pad, A_PAD), jnp.float32)

    if grid is None:
        full = lambda a: pl.BlockSpec(a.shape, lambda: (0,) * a.ndim)
        q_pad = pl.pallas_call(
            kern, out_shape=out_shape,
            in_specs=[full(op) for op in operands],
            out_specs=pl.BlockSpec((b_pad, A_PAD), lambda: (0, 0)),
            scratch_shapes=scratch,
            cost_estimate=cost,
        )(*operands)
    else:
        # Batch-tiled grid (useful on v7x for large B). Weight blocks use
        # constant index maps so they stay resident across grid steps.
        const = lambda a: pl.BlockSpec(a.shape, lambda i: (0,) * a.ndim)
        q_pad = pl.pallas_call(
            kern, out_shape=out_shape, grid=grid,
            in_specs=[pl.BlockSpec((tb, S), lambda i: (i, 0)),
                      pl.BlockSpec((tb, P), lambda i: (i, 0))]
                     + [const(w) for w in weights],
            out_specs=pl.BlockSpec((tb, A_PAD), lambda i: (i, 0)),
            scratch_shapes=scratch,
            cost_estimate=cost,
            compiler_params=pltpu.CompilerParams(
                dimension_semantics=("parallel",)),
        )(*operands)

    return q_pad[:B, :action_size]


# --------------------------------------------------------------------------
# Deterministic parameter initialization (matches module's layer shapes).
# Weights stored (in, out): x @ W + b  ==  PyTorch's x @ W.T + b.
# --------------------------------------------------------------------------
def init_params(key, input_size, hidden_layers, action_size):
    sizes = [input_size] + list(hidden_layers) + [action_size]
    params = []
    for i in range(len(sizes) - 1):
        fan_in, fan_out = sizes[i], sizes[i + 1]
        key, wkey = jax.random.split(key)
        if i < len(sizes) - 2:
            std = np.sqrt(2.0 / fan_in)          # kaiming_normal_, relu
        else:
            std = 1.0 / np.sqrt(fan_in)
        w = std * jax.random.normal(wkey, (fan_in, fan_out), dtype=jnp.float32)
        b = jnp.zeros((fan_out,), dtype=jnp.float32)
        params.append((w, b))
    return params


# --------------------------------------------------------------------------
# One-time (host-side) preparation of lane-padded weight slabs.  A single W1
# slab (no per-action copies); padding is exact zeros -> semantics unchanged.
# --------------------------------------------------------------------------
def prepare_kernel_params(params, state_size, action_size):
    (w1, b1), (w2, b2), (w3, b3) = params
    w1 = np.asarray(w1, np.float32)
    w2 = np.asarray(w2, np.float32)
    w3 = np.asarray(w3, np.float32)
    b1 = np.asarray(b1, np.float32).reshape(-1)
    b2 = np.asarray(b2, np.float32).reshape(-1)
    b3 = np.asarray(b3, np.float32).reshape(-1)

    in_size = w1.shape[0]                        # S + P
    H1, H2, A = w1.shape[1], w2.shape[1], action_size
    assert in_size <= IN_PAD and H1 <= H_PAD and H2 <= H_PAD and A <= A_PAD

    w1p = np.zeros((IN_PAD, H_PAD), np.float32); w1p[:in_size, :H1] = w1
    b1p = np.zeros((1, H_PAD), np.float32);      b1p[0, :H1] = b1
    w2p = np.zeros((H_PAD, H_PAD), np.float32);  w2p[:H1, :H2] = w2
    b2p = np.zeros((1, H_PAD), np.float32);      b2p[0, :H2] = b2
    w3p = np.zeros((H_PAD, A_PAD), np.float32);  w3p[:H2, :A] = w3
    b3p = np.zeros((1, A_PAD), np.float32);      b3p[0, :A] = b3

    return {"w1": jnp.asarray(w1p), "b1": jnp.asarray(b1p),
            "w2": jnp.asarray(w2p), "b2": jnp.asarray(b2p),
            "w3": jnp.asarray(w3p), "b3": jnp.asarray(b3p)}


# --------------------------------------------------------------------------
# Pure-JAX reference of the exact multipass forward (for the self-test).
# --------------------------------------------------------------------------
def reference_forward(state, action_parameters, params, state_size,
                      action_size, offsets):
    hp = jax.lax.Precision.HIGHEST
    B = state.shape[0]
    P = action_parameters.shape[1]
    A = action_size
    col = jnp.arange(P)
    lo = jnp.asarray(offsets[:-1])[:, None]
    hi = jnp.asarray(offsets[1:])[:, None]
    masks = ((col[None, :] >= lo) & (col[None, :] < hi)).astype(state.dtype)
    ap = action_parameters[None, :, :] * masks[:, None, :]          # (A, B, P)
    st = jnp.broadcast_to(state[None, :, :], (A, B, state_size))
    x = jnp.concatenate([st, ap], axis=-1).reshape(A * B, state_size + P)

    (w1, b1), (w2, b2), (w3, b3) = params
    h = jnp.maximum(jnp.dot(x, w1, precision=hp) + b1, 0.0)
    h = jnp.maximum(jnp.dot(h, w2, precision=hp) + b2, 0.0)
    q_all = (jnp.dot(h, w3, precision=hp) + b3).reshape(A, B, A)
    return jnp.diagonal(q_all, axis1=0, axis2=2)                     # (B, A)


if __name__ == "__main__":
    # Small, module-consistent shapes.
    state_size = 16
    action_parameter_size_list = np.array([2, 3, 4])
    action_size = len(action_parameter_size_list)                    # A = 3
    hidden_layers = (32, 32)
    batch = 8

    offsets = np.insert(action_parameter_size_list.cumsum(), 0, 0)   # [0,2,5,9]
    param_size = int(action_parameter_size_list.sum())               # P = 9
    input_size = state_size + param_size                             # 25

    key = jax.random.PRNGKey(0)
    key, k_state, k_ap, k_state2, k_ap2 = jax.random.split(key, 5)
    state = jax.random.normal(k_state, (batch, state_size), dtype=jnp.float32)
    action_parameters = jax.random.normal(
        k_ap, (batch, param_size), dtype=jnp.float32)

    params = init_params(key, input_size, hidden_layers, action_size)
    kparams = prepare_kernel_params(params, state_size, action_size)

    # Gridless single-invocation path (best for small B on v5e/v6e).
    Q = multipass_q_actor_forward(state, action_parameters, kparams,
                                  state_size, action_size, offsets)
    Q = jax.block_until_ready(Q)
    assert Q.shape == (batch, action_size)
    Q_ref = reference_forward(state, action_parameters, params, state_size,
                              action_size, offsets)
    np.testing.assert_allclose(np.asarray(Q), np.asarray(Q_ref),
                               rtol=1e-5, atol=1e-5)

    # Batch-tiled parallel-grid path (v7x / large-B); same kernel, row grid.
    big_batch = 32
    state2 = jax.random.normal(k_state2, (big_batch, state_size),
                               dtype=jnp.float32)
    ap2 = jax.random.normal(k_ap2, (big_batch, param_size), dtype=jnp.float32)
    Q2 = multipass_q_actor_forward(state2, ap2, kparams, state_size,
                                   action_size, offsets, batch_tile=8)
    Q2 = jax.block_until_ready(Q2)
    Q2_ref = reference_forward(state2, ap2, params, state_size, action_size,
                               offsets)
    np.testing.assert_allclose(np.asarray(Q2), np.asarray(Q2_ref),
                               rtol=1e-5, atol=1e-5)

    print("KERNEL_OK")
</pallas_src>

<mosaic_0001>
module attributes {stable_mosaic.version = 11 : i64} {
  func.func @fused_multipass_kernel(%arg0: memref<8x16xf32, #tpu.memory_space<vmem>>, %arg1: memref<8x9xf32, #tpu.memory_space<vmem>>, %arg2: memref<128x128xf32, #tpu.memory_space<vmem>>, %arg3: memref<1x128xf32, #tpu.memory_space<vmem>>, %arg4: memref<128x128xf32, #tpu.memory_space<vmem>>, %arg5: memref<1x128xf32, #tpu.memory_space<vmem>>, %arg6: memref<128x128xf32, #tpu.memory_space<vmem>>, %arg7: memref<1x128xf32, #tpu.memory_space<vmem>>, %arg8: memref<8x128xf32, #tpu.memory_space<vmem>>, %arg9: memref<24x128xf32, #tpu.memory_space<vmem>>) attributes {dimension_semantics = [], scalar_prefetch = 0 : i64, scratch_operands = 1 : i64, tpu.core_type = #tpu.core_type<tc>} {
    %cst = arith.constant 0.000000e+00 : f32
    %0 = vector.broadcast %cst : f32 to vector<24x128xf32>
    %c0 = arith.constant 0 : index
    %c0_0 = arith.constant 0 : index
    %1 = vector.load %arg9[%c0, %c0_0] : memref<24x128xf32, #tpu.memory_space<vmem>>, vector<24x128xf32>
    tpu.vector_store %arg9[%c0, %c0_0], %0 {strides = array<i32>} : memref<24x128xf32, #tpu.memory_space<vmem>>, vector<24x128xf32>,
    %c0_1 = arith.constant 0 : index
    %c0_2 = arith.constant 0 : index
    %2 = vector.load %arg0[%c0_1, %c0_2] : memref<8x16xf32, #tpu.memory_space<vmem>>, vector<8x16xf32>
    %c0_3 = arith.constant 0 : index
    %c0_4 = arith.constant 0 : index
    %3 = vector.load %arg1[%c0_3, %c0_4] : memref<8x9xf32, #tpu.memory_space<vmem>>, vector<8x9xf32>
    %c0_5 = arith.constant 0 : index
    %c0_6 = arith.constant 0 : index
    %4 = vector.load %arg9[%c0_5, %c0_6] : memref<24x128xf32, #tpu.memory_space<vmem>>, vector<8x16xf32>
    tpu.vector_store %arg9[%c0_5, %c0_6], %2 {strides = array<i32>} : memref<24x128xf32, #tpu.memory_space<vmem>>, vector<8x16xf32>,
    %5 = vector.extract_strided_slice %3 {offsets = [0, 0], sizes = [8, 2], strides = [1, 1]} : vector<8x9xf32> to vector<8x2xf32>
    %c0_7 = arith.constant 0 : index
    %c16 = arith.constant 16 : index
    %6 = vector.load %arg9[%c0_7, %c16] : memref<24x128xf32, #tpu.memory_space<vmem>>, vector<8x2xf32>
    tpu.vector_store %arg9[%c0_7, %c16], %5 {strides = array<i32>} : memref<24x128xf32, #tpu.memory_space<vmem>>, vector<8x2xf32>,
    %c8 = arith.constant 8 : index
    %c0_8 = arith.constant 0 : index
    %7 = vector.load %arg9[%c8, %c0_8] : memref<24x128xf32, #tpu.memory_space<vmem>>, vector<8x16xf32>
    tpu.vector_store %arg9[%c8, %c0_8], %2 {strides = array<i32>} : memref<24x128xf32, #tpu.memory_space<vmem>>, vector<8x16xf32>,
    %8 = vector.extract_strided_slice %3 {offsets = [0, 2], sizes = [8, 3], strides = [1, 1]} : vector<8x9xf32> to vector<8x3xf32>
    %c8_9 = arith.constant 8 : index
    %c18 = arith.constant 18 : index
    %9 = vector.load %arg9[%c8_9, %c18] : memref<24x128xf32, #tpu.memory_space<vmem>>, vector<8x3xf32>
    tpu.vector_store %arg9[%c8_9, %c18], %8 {strides = array<i32>} : memref<24x128xf32, #tpu.memory_space<vmem>>, vector<8x3xf32>,
    %c16_10 = arith.constant 16 : index
    %c0_11 = arith.constant 0 : index
    %10 = vector.load %arg9[%c16_10, %c0_11] : memref<24x128xf32, #tpu.memory_space<vmem>>, vector<8x16xf32>
    tpu.vector_store %arg9[%c16_10, %c0_11], %2 {strides = array<i32>} : memref<24x128xf32, #tpu.memory_space<vmem>>, vector<8x16xf32>,
    %11 = vector.extract_strided_slice %3 {offsets = [0, 5], sizes = [8, 4], strides = [1, 1]} : vector<8x9xf32> to vector<8x4xf32>
    %c16_12 = arith.constant 16 : index
    %c21 = arith.constant 21 : index
    %12 = vector.load %arg9[%c16_12, %c21] : memref<24x128xf32, #tpu.memory_space<vmem>>, vector<8x4xf32>
    tpu.vector_store %arg9[%c16_12, %c21], %11 {strides = array<i32>} : memref<24x128xf32, #tpu.memory_space<vmem>>, vector<8x4xf32>,
    %c0_13 = arith.constant 0 : index
    %c0_14 = arith.constant 0 : index
    %13 = vector.load %arg9[%c0_13, %c0_14] : memref<24x128xf32, #tpu.memory_space<vmem>>, vector<24x128xf32>
    %c0_15 = arith.constant 0 : index
    %c0_16 = arith.constant 0 : index
    %14 = vector.load %arg2[%c0_15, %c0_16] : memref<128x128xf32, #tpu.memory_space<vmem>>, vector<128x128xf32>
    %cst_17 = arith.constant dense<0.000000e+00> : vector<24x128xf32>
    %15 = tpu.matmul %13, %14, %cst_17 {dimension_numbers = #tpu.dot_dimension_numbers<[1], [0], [0], [1], [0, 0, 1, 1], [], []>} : vector<24x128xf32>, vector<128x128xf32>, vector<24x128xf32> -> vector<24x128xf32>
    %c0_18 = arith.constant 0 : index
    %c0_19 = arith.constant 0 : index
    %16 = vector.load %arg3[%c0_18, %c0_19] : memref<1x128xf32, #tpu.memory_space<vmem>>, vector<1x128xf32>
    %17 = vector.broadcast %16 : vector<1x128xf32> to vector<24x128xf32>
    %18 = arith.addf %15, %17 : vector<24x128xf32>
    %cst_20 = arith.constant 0.000000e+00 : f32
    %19 = vector.broadcast %cst_20 : f32 to vector<24x128xf32>
    %20 = arith.maximumf %18, %19 : vector<24x128xf32>
    %c0_21 = arith.constant 0 : index
    %c0_22 = arith.constant 0 : index
    %21 = vector.load %arg4[%c0_21, %c0_22] : memref<128x128xf32, #tpu.memory_space<vmem>>, vector<128x128xf32>
    %cst_23 = arith.constant dense<0.000000e+00> : vector<24x128xf32>
    %22 = tpu.matmul %20, %21, %cst_23 {dimension_numbers = #tpu.dot_dimension_numbers<[1], [0], [0], [1], [0, 0, 1, 1], [], []>} : vector<24x128xf32>, vector<128x128xf32>, vector<24x128xf32> -> vector<24x128xf32>
    %c0_24 = arith.constant 0 : index
    %c0_25 = arith.constant 0 : index
    %23 = vector.load %arg5[%c0_24, %c0_25] : memref<1x128xf32, #tpu.memory_space<vmem>>, vector<1x128xf32>
    %24 = vector.broadcast %23 : vector<1x128xf32> to vector<24x128xf32>
    %25 = arith.addf %22, %24 : vector<24x128xf32>
    %cst_26 = arith.constant 0.000000e+00 : f32
    %26 = vector.broadcast %cst_26 : f32 to vector<24x128xf32>
    %27 = arith.maximumf %25, %26 : vector<24x128xf32>
    %c0_27 = arith.constant 0 : index
    %c0_28 = arith.constant 0 : index
    %28 = vector.load %arg6[%c0_27, %c0_28] : memref<128x128xf32, #tpu.memory_space<vmem>>, vector<128x128xf32>
    %cst_29 = arith.constant dense<0.000000e+00> : vector<24x128xf32>
    %29 = tpu.matmul %27, %28, %cst_29 {dimension_numbers = #tpu.dot_dimension_numbers<[1], [0], [0], [1], [0, 0, 1, 1], [], []>} : vector<24x128xf32>, vector<128x128xf32>, vector<24x128xf32> -> vector<24x128xf32>
    %30 = tpu.iota {dimensions = array<i32: 1>} : vector<8x128xi32>
    %cst_30 = arith.constant 0.000000e+00 : f32
    %31 = vector.broadcast %cst_30 : f32 to vector<8x128xf32>
    %c0_i32 = arith.constant 0 : i32
    %32 = vector.broadcast %c0_i32 : i32 to vector<8x128xi32>
    %33 = arith.cmpi eq, %30, %32 : vector<8x128xi32>
    %34 = vector.extract_strided_slice %29 {offsets = [0, 0], sizes = [8, 128], strides = [1, 1]} : vector<24x128xf32> to vector<8x128xf32>
    %35 = arith.select %33, %34, %31 : vector<8x128xi1>, vector<8x128xf32>
    %c1_i32 = arith.constant 1 : i32
    %36 = vector.broadcast %c1_i32 : i32 to vector<8x128xi32>
    %37 = arith.cmpi eq, %30, %36 : vector<8x128xi32>
    %38 = vector.extract_strided_slice %29 {offsets = [8, 0], sizes = [8, 128], strides = [1, 1]} : vector<24x128xf32> to vector<8x128xf32>
    %39 = arith.select %37, %38, %35 : vector<8x128xi1>, vector<8x128xf32>
    %c2_i32 = arith.constant 2 : i32
    %40 = vector.broadcast %c2_i32 : i32 to vector<8x128xi32>
    %41 = arith.cmpi eq, %30, %40 : vector<8x128xi32>
    %42 = vector.extract_strided_slice %29 {offsets = [16, 0], sizes = [8, 128], strides = [1, 1]} : vector<24x128xf32> to vector<8x128xf32>
    %43 = arith.select %41, %42, %39 : vector<8x128xi1>, vector<8x128xf32>
    %c0_31 = arith.constant 0 : index
    %c0_32 = arith.constant 0 : index
    %44 = vector.load %arg7[%c0_31, %c0_32] : memref<1x128xf32, #tpu.memory_space<vmem>>, vector<1x128xf32>
    %45 = vector.broadcast %44 : vector<1x128xf32> to vector<8x128xf32>
    %46 = arith.addf %43, %45 : vector<8x128xf32>
    %c0_33 = arith.constant 0 : index
    %c0_34 = arith.constant 0 : index
    %47 = vector.load %arg8[%c0_33, %c0_34] : memref<8x128xf32, #tpu.memory_space<vmem>>, vector<8x128xf32>
    tpu.vector_store %arg8[%c0_33, %c0_34], %46 {strides = array<i32>} : memref<8x128xf32, #tpu.memory_space<vmem>>, vector<8x128xf32>,
    return
  }
}

</mosaic_0001>

<llo_original>
// kernel: tpu_custom_call.1
$region0: #{tpu_custom_call.1}
  #allocation0 [shape = 'u32[]', space=smem, size = 0x4, offset = 0x4, fixed_abs, tag = 'smem constant byte address 0x4 - core index']
  #allocation1 [shape = 'u32[144,128]{1,0:T(1,128)}', space=vmem, size = 0x12000, scoped, tag = 'internal scratch']
  #allocation2 [shape = 'f32[24,128]{1,0:T(8,128)}', space=vmem, size = 0x3000, scoped, tag = 'scratch operand']
  %s0 = inlined_call_operand.hbm [shape: f32[8,16], index: 0, kind: input, shape index: {}]
  %s1 = inlined_call_operand.hbm [shape: f32[8,9], index: 1, kind: input, shape index: {}]
  %s2 = inlined_call_operand.hbm [shape: f32[128,128], index: 2, kind: input, shape index: {}]
  %s3 = inlined_call_operand.vmem [shape: f32[1,128], index: 3, kind: input, shape index: {}]
  %s4 = inlined_call_operand.hbm [shape: f32[128,128], index: 4, kind: input, shape index: {}]
  %s5 = inlined_call_operand.vmem [shape: f32[1,128], index: 5, kind: input, shape index: {}]
  %s6 = inlined_call_operand.hbm [shape: f32[128,128], index: 6, kind: input, shape index: {}]
  %s7 = inlined_call_operand.vmem [shape: f32[1,128], index: 7, kind: input, shape index: {}]
  %s8 = inlined_call_operand.hbm [shape: f32[8,128], index: 8, kind: output, shape index: {}]
  %s9 = sld [smem:[#allocation0]]
  $region62: #{tpu_custom_call.1} parent=0
    _
  %s11 = ssub.s32 1, %s9
  %s12 = scalar_select 0, %s11, %s9
  $region1: #{tpu_custom_call.1} parent=0
    #allocation3 [shape = 'u8[4096]{0}', space=vmem, size = 0x1000, scoped, tag = 'input window, operand 0, single buffered']
    #allocation4 [shape = 's32[1]{0}', space=sflag, size = 0x4, scoped, tag = 'scoped memory for tpu_custom_call.1']
    #allocation5 [shape = 's32[1]{0}', space=sflag, size = 0x4, scoped, tag = 'scoped memory for tpu_custom_call.1']
    #allocation6 [shape = 'u8[4096]{0}', space=vmem, size = 0x1000, scoped, tag = 'input window, operand 1, single buffered']
    #allocation7 [shape = 's32[1]{0}', space=sflag, size = 0x4, scoped, tag = 'scoped memory for tpu_custom_call.1']
    #allocation8 [shape = 'u8[65536]{0}', space=vmem, size = 0x10000, scoped, tag = 'input window, operand 2, single buffered']
    #allocation9 [shape = 'u8[65536]{0}', space=vmem, size = 0x10000, scoped, tag = 'input window, operand 4, single buffered']
    #allocation10 [shape = 's32[1]{0}', space=sflag, size = 0x4, scoped, tag = 'scoped memory for tpu_custom_call.1']
    #allocation11 [shape = 'u8[65536]{0}', space=vmem, size = 0x10000, scoped, tag = 'input window, operand 6, single buffered']
    #allocation12 [shape = 'u8[4096]{0}', space=vmem, size = 0x1000, scoped, tag = 'output window, operand 0, single buffered']
    %13 = vsyncpa [#allocation4], 0
    %14 = vsyncpa [#allocation7], 0
    %15 = vsyncpa [#allocation10], 0
    %16 = vsyncpa [#allocation5], 0
    // Predicated region
    $region2: #{tpu_custom_call.1} parent=1 // pred_check
      _
    $region3: #{tpu_custom_call.1} parent=1 // pred_check_branch
      %18 = sbr.rel (0) target = $region5
    $region4: #{tpu_custom_call.1} parent=1 // pred_region
      %s20 = ssub.s32 128, 128
      %21 = vsyncadd [#allocation4], %s20
      %s23 = sshll.u32 [#allocation3], 4
      %s24 = int_to_ptr.vmem [resolvable:$true] %s23
      %26 = dma.hbm_to_vmem [thread:$0]  %s0, 128, %s24, [#allocation4]
    $region5: #{tpu_custom_call.1} parent=1 // pred_fallthru
      _
    // Predicated region
    $region6: #{tpu_custom_call.1} parent=1 // pred_check
      _
    $region7: #{tpu_custom_call.1} parent=1 // pred_check_branch
      %28 = sbr.rel (0) target = $region9
    $region8: #{tpu_custom_call.1} parent=1 // pred_region
      %s30 = ssub.s32 128, 128
      %31 = vsyncadd [#allocation7], %s30
      %s33 = sshll.u32 [#allocation6], 4
      %s34 = int_to_ptr.vmem [resolvable:$true] %s33
      %36 = dma.hbm_to_vmem [thread:$0]  %s1, 128, %s34, [#allocation7]
    $region9: #{tpu_custom_call.1} parent=1 // pred_fallthru
      _
    // Predicated region
    $region10: #{tpu_custom_call.1} parent=1 // pred_check
      _
    $region11: #{tpu_custom_call.1} parent=1 // pred_check_branch
      %38 = sbr.rel (0) target = $region13
    $region12: #{tpu_custom_call.1} parent=1 // pred_region
      %s40 = ssub.s32 2048, 2048
      %41 = vsyncadd [#allocation7], %s40
      %s42 = sshll.u32 [#allocation8], 4
      %s43 = int_to_ptr.vmem [resolvable:$true] %s42
      %48 = dma.hbm_to_vmem [thread:$0]  %s2, 2048, %s43, [#allocation7], 128, 128, 8
    $region13: #{tpu_custom_call.1} parent=1 // pred_fallthru
      _
    // Predicated region
    $region14: #{tpu_custom_call.1} parent=1 // pred_check
      _
    $region15: #{tpu_custom_call.1} parent=1 // pred_check_branch
      %50 = sbr.rel (0) target = $region17
    $region16: #{tpu_custom_call.1} parent=1 // pred_region
      _
    $region17: #{tpu_custom_call.1} parent=1 // pred_fallthru
      _
    // Predicated region
    $region18: #{tpu_custom_call.1} parent=1 // pred_check
      _
    $region19: #{tpu_custom_call.1} parent=1 // pred_check_branch
      %52 = sbr.rel (0) target = $region21
    $region20: #{tpu_custom_call.1} parent=1 // pred_region
      %s54 = ssub.s32 2048, 2048
      %55 = vsyncadd [#allocation10], %s54
      %s56 = sshll.u32 [#allocation9], 4
      %s57 = int_to_ptr.vmem [resolvable:$true] %s56
      %62 = dma.hbm_to_vmem [thread:$0]  %s4, 2048, %s57, [#allocation10], 128, 128, 8
    $region21: #{tpu_custom_call.1} parent=1 // pred_fallthru
      _
    // Predicated region
    $region22: #{tpu_custom_call.1} parent=1 // pred_check
      _
    $region23: #{tpu_custom_call.1} parent=1 // pred_check_branch
      %64 = sbr.rel (0) target = $region25
    $region24: #{tpu_custom_call.1} parent=1 // pred_region
      _
    $region25: #{tpu_custom_call.1} parent=1 // pred_fallthru
      _
    // Predicated region
    $region26: #{tpu_custom_call.1} parent=1 // pred_check
      _
    $region27: #{tpu_custom_call.1} parent=1 // pred_check_branch
      %66 = sbr.rel (0) target = $region29
    $region28: #{tpu_custom_call.1} parent=1 // pred_region
      %s68 = ssub.s32 2048, 2048
      %69 = vsyncadd [#allocation10], %s68
      %s70 = sshll.u32 [#allocation11], 4
      %s71 = int_to_ptr.vmem [resolvable:$true] %s70
      %76 = dma.hbm_to_vmem [thread:$0]  %s6, 2048, %s71, [#allocation10], 128, 128, 8
    $region29: #{tpu_custom_call.1} parent=1 // pred_fallthru
      _
    // Predicated region
    $region30: #{tpu_custom_call.1} parent=1 // pred_check
      _
    $region31: #{tpu_custom_call.1} parent=1 // pred_check_branch
      %78 = sbr.rel (0) target = $region33
    $region32: #{tpu_custom_call.1} parent=1 // pred_region
      _
    $region33: #{tpu_custom_call.1} parent=1 // pred_fallthru
      _
    // Predicated region
    $region34: #{tpu_custom_call.1} parent=1 // pred_check
      _
    $region35: #{tpu_custom_call.1} parent=1 // pred_check_branch
      %80 = sbr.rel (0) target = $region37
    $region36: #{tpu_custom_call.1} parent=1 // pred_region
      %81 = dma.done [#allocation4], 128
    $region37: #{tpu_custom_call.1} parent=1 // pred_fallthru
      _
    // Predicated region
    $region38: #{tpu_custom_call.1} parent=1 // pred_check
      _
    $region39: #{tpu_custom_call.1} parent=1 // pred_check_branch
      %83 = sbr.rel (0) target = $region41
    $region40: #{tpu_custom_call.1} parent=1 // pred_region
      %84 = dma.done [#allocation7], 128
    $region41: #{tpu_custom_call.1} parent=1 // pred_fallthru
      _
    // Predicated region
    $region42: #{tpu_custom_call.1} parent=1 // pred_check
      _
    $region43: #{tpu_custom_call.1} parent=1 // pred_check_branch
      %86 = sbr.rel (0) target = $region45
    $region44: #{tpu_custom_call.1} parent=1 // pred_region
      %87 = dma.done [#allocation7], 2048
    $region45: #{tpu_custom_call.1} parent=1 // pred_fallthru
      _
    // Predicated region
    $region46: #{tpu_custom_call.1} parent=1 // pred_check
      _
    $region47: #{tpu_custom_call.1} parent=1 // pred_check_branch
      %89 = sbr.rel (0) target = $region49
    $region48: #{tpu_custom_call.1} parent=1 // pred_region
      %90 = dma.done [#allocation10], 2048
    $region49: #{tpu_custom_call.1} parent=1 // pred_fallthru
      _
    // Predicated region
    $region50: #{tpu_custom_call.1} parent=1 // pred_check
      _
    $region51: #{tpu_custom_call.1} parent=1 // pred_check_branch
      %92 = sbr.rel (0) target = $region53
    $region52: #{tpu_custom_call.1} parent=1 // pred_region
      %93 = dma.done [#allocation10], 2048
    $region53: #{tpu_custom_call.1} parent=1 // pred_fallthru
      _
    %94 = vst [vmem:[#allocation2] sm:$0xff] 0.0
    %95 = vst [vmem:[#allocation2 + $0x8] sm:$0xff] 0.0
    %96 = vst [vmem:[#allocation2 + $0x10] sm:$0xff] 0.0
    %v97 = vld [vmem:[#allocation3] sm:$0xff]
    %v98 = vld [vmem:[#allocation6] sm:$0xff]
    %vm99 = vcmask 130048
    %100 = vst.msk [vmem:[#allocation2] sm:$0xff] %vm99, %v97
    %102 = vrot.lane.b32.xlu0 %v98, 16
    %v103 = vpop.permute.xlu0 %102
    %vm105 = vcmask 146560
    %106 = vst.msk [vmem:[#allocation2] sm:$0xff] %vm105, %v103
    %107 = vst.msk [vmem:[#allocation2 + $0x8] sm:$0xff] %vm99, %v97
    %vm108 = vcmask 171152
    %109 = vst.msk [vmem:[#allocation2 + $0x8] sm:$0xff] %vm108, %v103
    %110 = vst.msk [vmem:[#allocation2 + $0x10] sm:$0xff] %vm99, %v97
    %vm111 = vcmask 203944
    %112 = vst.msk [vmem:[#allocation2 + $0x10] sm:$0xff] %vm111, %v103
    %v113 = vld [vmem:[#allocation2] sm:$0xff]
    %v114 = vld [vmem:[#allocation2 + $0x8] sm:$0xff]
    %v115 = vld [vmem:[#allocation2 + $0x10] sm:$0xff]
    %v116 = vld [vmem:[#allocation8] sm:$0xff]
    %v117 = vld [vmem:[#allocation8 + $0x8] sm:$0xff]
    %v118 = vld [vmem:[#allocation8 + $0x10] sm:$0xff]
    %v119 = vld [vmem:[#allocation8 + $0x18] sm:$0xff]
    %v120 = vld [vmem:[#allocation8 + $0x20] sm:$0xff]
    %v121 = vld [vmem:[#allocation8 + $0x28] sm:$0xff]
    %v122 = vld [vmem:[#allocation8 + $0x30] sm:$0xff]
    %v123 = vld [vmem:[#allocation8 + $0x38] sm:$0xff]
    %v124 = vld [vmem:[#allocation8 + $0x40] sm:$0xff]
    %v125 = vld [vmem:[#allocation8 + $0x48] sm:$0xff]
    %v126 = vld [vmem:[#allocation8 + $0x50] sm:$0xff]
    %v127 = vld [vmem:[#allocation8 + $0x58] sm:$0xff]
    %v128 = vld [vmem:[#allocation8 + $0x60] sm:$0xff]
    %v129 = vld [vmem:[#allocation8 + $0x68] sm:$0xff]
    %v130 = vld [vmem:[#allocation8 + $0x70] sm:$0xff]
    %v131 = vld [vmem:[#allocation8 + $0x78] sm:$0xff]
    %v132 = vld [vmem:[%s3] sm:$0x1]
    %v134 = vlaneseq
    %v135 = vshrl.u32 %v134, 7
    %v136 = vsub.s32 0, %v135
    %v137 = vrot.slane %v132, %v136
    %139 = vmatprep.subr.mxu0 0.0
    %140 = vmatpush1.msra.mxu0 %v116
    %141 = vmatprep.subr.mxu0 0.0
    %142 = vmatpush1.msra.mxu0 %v117
    %143 = vmatprep.subr.mxu0 0.0
    %144 = vmatpush1.msra.mxu0 %v118
    %145 = vmatprep.subr.mxu0 0.0
    %146 = vmatpush1.msra.mxu0 %v119
    %147 = vmatprep.subr.mxu0 0.0
    %148 = vmatpush1.msra.mxu0 %v120
    %149 = vmatprep.subr.mxu0 0.0
    %150 = vmatpush1.msra.mxu0 %v121
    %151 = vmatprep.subr.mxu0 0.0
    %152 = vmatpush1.msra.mxu0 %v122
    %153 = vmatprep.subr.mxu0 0.0
    %154 = vmatpush1.msra.mxu0 %v123
    %155 = vmatprep.subr.mxu0 0.0
    %156 = vmatpush1.msra.mxu0 %v124
    %157 = vmatprep.subr.mxu0 0.0
    %158 = vmatpush1.msra.mxu0 %v125
    %159 = vmatprep.subr.mxu0 0.0
    %160 = vmatpush1.msra.mxu0 %v126
    %161 = vmatprep.subr.mxu0 0.0
    %162 = vmatpush1.msra.mxu0 %v127
    %163 = vmatprep.subr.mxu0 0.0
    %164 = vmatpush1.msra.mxu0 %v128
    %165 = vmatprep.subr.mxu0 0.0
    %166 = vmatpush1.msra.mxu0 %v129
    %167 = vmatprep.subr.mxu0 0.0
    %168 = vmatpush1.msra.mxu0 %v130
    %169 = vmatprep.subr.mxu0 0.0
    %170 = vmatpush1.msra.mxu0 %v131
    %171 = vmatprep.subr.mxu0 0.0
    %172 = vmatpush1.msra.mxu0 0.0
    %173 = vmatprep.subr.mxu0 0.0
    %174 = vmatpush1.msra.mxu0 0.0
    %175 = vmatprep.subr.mxu0 0.0
    %176 = vmatpush1.msra.mxu0 0.0
    %177 = vmatprep.subr.mxu0 0.0
    %178 = vmatpush1.msra.mxu0 0.0
    %179 = vmatprep.subr.mxu0 0.0
    %180 = vmatpush1.msra.mxu0 0.0
    %181 = vmatprep.subr.mxu0 0.0
    %182 = vmatpush1.msra.mxu0 0.0
    %183 = vmatprep.subr.mxu0 0.0
    %184 = vmatpush1.msra.mxu0 0.0
    %185 = vmatprep.subr.mxu0 0.0
    %186 = vmatpush1.msra.mxu0 0.0
    %187 = vmatprep.subr.mxu0 0.0
    %188 = vmatpush1.msra.mxu0 0.0
    %189 = vmatprep.subr.mxu0 0.0
    %190 = vmatpush1.msra.mxu0 0.0
    %191 = vmatprep.subr.mxu0 0.0
    %192 = vmatpush1.msra.mxu0 0.0
    %193 = vmatprep.subr.mxu0 0.0
    %194 = vmatpush1.msra.mxu0 0.0
    %195 = vmatprep.subr.mxu0 0.0
    %196 = vmatpush1.msra.mxu0 0.0
    %197 = vmatprep.subr.mxu0 0.0
    %198 = vmatpush1.msra.mxu0 0.0
    %199 = vmatprep.subr.mxu0 0.0
    %200 = vmatpush1.msra.mxu0 0.0
    %201 = vmatprep.subr.mxu0 0.0
    %202 = vmatpush1.msra.mxu0 0.0
    %203 = vmatprep.mubr.f32.mxu0 0.0
    %204 = vmatmul.mubr.f32.gmra.mrb[0].mxu0 %v113
    %v205 = vpop.f32.mrb[0].mxu0
    %v206 = vadd.f32 %v137, %v205
    %v207 = vpop.f32.mrb[0].mxu0
    %208 = vmatprep.mubr.f32.mxu0 0.0
    %209 = vmatmul.mubr.f32.gmra.mrb[0].mxu0 %v114
    %v210 = vpop.f32.mrb[0].mxu0
    %v211 = vadd.f32 %v137, %v210
    %v212 = vpop.f32.mrb[0].mxu0
    %213 = vmatprep.mubr.f32.mxu0 0.0
    %214 = vmatmul.mubr.f32.gmra.mrb[0].mxu0 %v115
    %v215 = vpop.f32.mrb[0].mxu0
    %v216 = vadd.f32 %v137, %v215
    %v217 = vpop.f32.mrb[0].mxu0
    %218 = vdwg.mxu0
    %v219 = vmax.f32 %v206, 0.0
    %v220 = vmax.f32 %v211, 0.0
    %v221 = vmax.f32 %v216, 0.0
    %v222 = vld [vmem:[#allocation9] sm:$0xff]
    %v223 = vld [vmem:[#allocation9 + $0x8] sm:$0xff]
    %v224 = vld [vmem:[#allocation9 + $0x10] sm:$0xff]
    %v225 = vld [vmem:[#allocation9 + $0x18] sm:$0xff]
    %v226 = vld [vmem:[#allocation9 + $0x20] sm:$0xff]
    %v227 = vld [vmem:[#allocation9 + $0x28] sm:$0xff]
    %v228 = vld [vmem:[#allocation9 + $0x30] sm:$0xff]
    %v229 = vld [vmem:[#allocation9 + $0x38] sm:$0xff]
    %v230 = vld [vmem:[#allocation9 + $0x40] sm:$0xff]
    %v231 = vld [vmem:[#allocation9 + $0x48] sm:$0xff]
    %v232 = vld [vmem:[#allocation9 + $0x50] sm:$0xff]
    %v233 = vld [vmem:[#allocation9 + $0x58] sm:$0xff]
    %v234 = vld [vmem:[#allocation9 + $0x60] sm:$0xff]
    %v235 = vld [vmem:[#allocation9 + $0x68] sm:$0xff]
    %v236 = vld [vmem:[#allocation9 + $0x70] sm:$0xff]
    %v237 = vld [vmem:[#allocation9 + $0x78] sm:$0xff]
    %v238 = vld [vmem:[%s5] sm:$0x1]
    %v240 = vlaneseq
    %v241 = vshrl.u32 %v240, 7
    %v242 = vsub.s32 0, %v241
    %v243 = vrot.slane %v238, %v242
    %245 = vmatprep.subr.mxu0 0.0
    %246 = vmatpush1.msra.mxu0 %v222
    %247 = vmatprep.subr.mxu0 0.0
    %248 = vmatpush1.msra.mxu0 %v223
    %249 = vmatprep.subr.mxu0 0.0
    %250 = vmatpush1.msra.mxu0 %v224
    %251 = vmatprep.subr.mxu0 0.0
    %252 = vmatpush1.msra.mxu0 %v225
    %253 = vmatprep.subr.mxu0 0.0
    %254 = vmatpush1.msra.mxu0 %v226
    %255 = vmatprep.subr.mxu0 0.0
    %256 = vmatpush1.msra.mxu0 %v227
    %257 = vmatprep.subr.mxu0 0.0
    %258 = vmatpush1.msra.mxu0 %v228
    %259 = vmatprep.subr.mxu0 0.0
    %260 = vmatpush1.msra.mxu0 %v229
    %261 = vmatprep.subr.mxu0 0.0
    %262 = vmatpush1.msra.mxu0 %v230
    %263 = vmatprep.subr.mxu0 0.0
    %264 = vmatpush1.msra.mxu0 %v231
    %265 = vmatprep.subr.mxu0 0.0
    %266 = vmatpush1.msra.mxu0 %v232
    %267 = vmatprep.subr.mxu0 0.0
    %268 = vmatpush1.msra.mxu0 %v233
    %269 = vmatprep.subr.mxu0 0.0
    %270 = vmatpush1.msra.mxu0 %v234
    %271 = vmatprep.subr.mxu0 0.0
    %272 = vmatpush1.msra.mxu0 %v235
    %273 = vmatprep.subr.mxu0 0.0
    %274 = vmatpush1.msra.mxu0 %v236
    %275 = vmatprep.subr.mxu0 0.0
    %276 = vmatpush1.msra.mxu0 %v237
    %277 = vmatprep.subr.mxu0 0.0
    %278 = vmatpush1.msra.mxu0 0.0
    %279 = vmatprep.subr.mxu0 0.0
    %280 = vmatpush1.msra.mxu0 0.0
    %281 = vmatprep.subr.mxu0 0.0
    %282 = vmatpush1.msra.mxu0 0.0
    %283 = vmatprep.subr.mxu0 0.0
    %284 = vmatpush1.msra.mxu0 0.0
    %285 = vmatprep.subr.mxu0 0.0
    %286 = vmatpush1.msra.mxu0 0.0
    %287 = vmatprep.subr.mxu0 0.0
    %288 = vmatpush1.msra.mxu0 0.0
    %289 = vmatprep.subr.mxu0 0.0
    %290 = vmatpush1.msra.mxu0 0.0
    %291 = vmatprep.subr.mxu0 0.0
    %292 = vmatpush1.msra.mxu0 0.0
    %293 = vmatprep.subr.mxu0 0.0
    %294 = vmatpush1.msra.mxu0 0.0
    %295 = vmatprep.subr.mxu0 0.0
    %296 = vmatpush1.msra.mxu0 0.0
    %297 = vmatprep.subr.mxu0 0.0
    %298 = vmatpush1.msra.mxu0 0.0
    %299 = vmatprep.subr.mxu0 0.0
    %300 = vmatpush1.msra.mxu0 0.0
    %301 = vmatprep.subr.mxu0 0.0
    %302 = vmatpush1.msra.mxu0 0.0
    %303 = vmatprep.subr.mxu0 0.0
    %304 = vmatpush1.msra.mxu0 0.0
    %305 = vmatprep.subr.mxu0 0.0
    %306 = vmatpush1.msra.mxu0 0.0
    %307 = vmatprep.subr.mxu0 0.0
    %308 = vmatpush1.msra.mxu0 0.0
    %309 = vmatprep.mubr.f32.mxu0 0.0
    %310 = vmatmul.mubr.f32.gmra.mrb[0].mxu0 %v219
    %v311 = vpop.f32.mrb[0].mxu0
    %v312 = vadd.f32 %v243, %v311
    %v313 = vpop.f32.mrb[0].mxu0
    %314 = vmatprep.mubr.f32.mxu0 0.0
    %315 = vmatmul.mubr.f32.gmra.mrb[0].mxu0 %v220
    %v316 = vpop.f32.mrb[0].mxu0
    %v317 = vadd.f32 %v243, %v316
    %v318 = vpop.f32.mrb[0].mxu0
    %319 = vmatprep.mubr.f32.mxu0 0.0
    %320 = vmatmul.mubr.f32.gmra.mrb[0].mxu0 %v221
    %v321 = vpop.f32.mrb[0].mxu0
    %v322 = vadd.f32 %v243, %v321
    %v323 = vpop.f32.mrb[0].mxu0
    %324 = vdwg.mxu0
    %v325 = vmax.f32 %v312, 0.0
    %v326 = vmax.f32 %v317, 0.0
    %v327 = vmax.f32 %v322, 0.0
    %v328 = vld [vmem:[#allocation11] sm:$0xff]
    %v329 = vld [vmem:[#allocation11 + $0x8] sm:$0xff]
    %v330 = vld [vmem:[#allocation11 + $0x10] sm:$0xff]
    %v331 = vld [vmem:[#allocation11 + $0x18] sm:$0xff]
    %v332 = vld [vmem:[#allocation11 + $0x20] sm:$0xff]
    %v333 = vld [vmem:[#allocation11 + $0x28] sm:$0xff]
    %v334 = vld [vmem:[#allocation11 + $0x30] sm:$0xff]
    %v335 = vld [vmem:[#allocation11 + $0x38] sm:$0xff]
    %v336 = vld [vmem:[#allocation11 + $0x40] sm:$0xff]
    %v337 = vld [vmem:[#allocation11 + $0x48] sm:$0xff]
    %v338 = vld [vmem:[#allocation11 + $0x50] sm:$0xff]
    %v339 = vld [vmem:[#allocation11 + $0x58] sm:$0xff]
    %v340 = vld [vmem:[#allocation11 + $0x60] sm:$0xff]
    %v341 = vld [vmem:[#allocation11 + $0x68] sm:$0xff]
    %v342 = vld [vmem:[#allocation11 + $0x70] sm:$0xff]
    %v343 = vld [vmem:[#allocation11 + $0x78] sm:$0xff]
    %344 = vmatprep.subr.mxu0 0.0
    %345 = vmatpush1.msra.mxu0 %v328
    %346 = vmatprep.subr.mxu0 0.0
    %347 = vmatpush1.msra.mxu0 %v329
    %348 = vmatprep.subr.mxu0 0.0
    %349 = vmatpush1.msra.mxu0 %v330
    %350 = vmatprep.subr.mxu0 0.0
    %351 = vmatpush1.msra.mxu0 %v331
    %352 = vmatprep.subr.mxu0 0.0
    %353 = vmatpush1.msra.mxu0 %v332
    %354 = vmatprep.subr.mxu0 0.0
    %355 = vmatpush1.msra.mxu0 %v333
    %356 = vmatprep.subr.mxu0 0.0
    %357 = vmatpush1.msra.mxu0 %v334
    %358 = vmatprep.subr.mxu0 0.0
    %359 = vmatpush1.msra.mxu0 %v335
    %360 = vmatprep.subr.mxu0 0.0
    %361 = vmatpush1.msra.mxu0 %v336
    %362 = vmatprep.subr.mxu0 0.0
    %363 = vmatpush1.msra.mxu0 %v337
    %364 = vmatprep.subr.mxu0 0.0
    %365 = vmatpush1.msra.mxu0 %v338
    %366 = vmatprep.subr.mxu0 0.0
    %367 = vmatpush1.msra.mxu0 %v339
    %368 = vmatprep.subr.mxu0 0.0
    %369 = vmatpush1.msra.mxu0 %v340
    %370 = vmatprep.subr.mxu0 0.0
    %371 = vmatpush1.msra.mxu0 %v341
    %372 = vmatprep.subr.mxu0 0.0
    %373 = vmatpush1.msra.mxu0 %v342
    %374 = vmatprep.subr.mxu0 0.0
    %375 = vmatpush1.msra.mxu0 %v343
    %376 = vmatprep.subr.mxu0 0.0
    %377 = vmatpush1.msra.mxu0 0.0
    %378 = vmatprep.subr.mxu0 0.0
    %379 = vmatpush1.msra.mxu0 0.0
    %380 = vmatprep.subr.mxu0 0.0
    %381 = vmatpush1.msra.mxu0 0.0
    %382 = vmatprep.subr.mxu0 0.0
    %383 = vmatpush1.msra.mxu0 0.0
    %384 = vmatprep.subr.mxu0 0.0
    %385 = vmatpush1.msra.mxu0 0.0
    %386 = vmatprep.subr.mxu0 0.0
    %387 = vmatpush1.msra.mxu0 0.0
    %388 = vmatprep.subr.mxu0 0.0
    %389 = vmatpush1.msra.mxu0 0.0
    %390 = vmatprep.subr.mxu0 0.0
    %391 = vmatpush1.msra.mxu0 0.0
    %392 = vmatprep.subr.mxu0 0.0
    %393 = vmatpush1.msra.mxu0 0.0
    %394 = vmatprep.subr.mxu0 0.0
    %395 = vmatpush1.msra.mxu0 0.0
    %396 = vmatprep.subr.mxu0 0.0
    %397 = vmatpush1.msra.mxu0 0.0
    %398 = vmatprep.subr.mxu0 0.0
    %399 = vmatpush1.msra.mxu0 0.0
    %400 = vmatprep.subr.mxu0 0.0
    %401 = vmatpush1.msra.mxu0 0.0
    %402 = vmatprep.subr.mxu0 0.0
    %403 = vmatpush1.msra.mxu0 0.0
    %404 = vmatprep.subr.mxu0 0.0
    %405 = vmatpush1.msra.mxu0 0.0
    %406 = vmatprep.subr.mxu0 0.0
    %407 = vmatpush1.msra.mxu0 0.0
    %408 = vmatprep.mubr.f32.mxu0 0.0
    %409 = vmatmul.mubr.f32.gmra.mrb[0].mxu0 %v325
    %v410 = vpop.f32.mrb[0].mxu0
    %v411 = vadd.f32 0.0, %v410
    %v412 = vpop.f32.mrb[0].mxu0
    %413 = vmatprep.mubr.f32.mxu0 0.0
    %414 = vmatmul.mubr.f32.gmra.mrb[0].mxu0 %v326
    %v415 = vpop.f32.mrb[0].mxu0
    %v416 = vadd.f32 0.0, %v415
    %v417 = vpop.f32.mrb[0].mxu0
    %418 = vmatprep.mubr.f32.mxu0 0.0
    %419 = vmatmul.mubr.f32.gmra.mrb[0].mxu0 %v327
    %v420 = vpop.f32.mrb[0].mxu0
    %v421 = vadd.f32 0.0, %v420
    %v422 = vpop.f32.mrb[0].mxu0
    %423 = vdwg.mxu0
    %v424 = vlaneseq
    %v425 = vand.u32 %v424, 127
    %vm426 = vcmp.eq.s32.totalorder %v425, 0
    %v427 = vsel %vm426, %v411, 0.0
    %vm428 = vcmp.eq.s32.totalorder %v425, 1
    %v429 = vsel %vm428, %v416, %v427
    %vm430 = vcmp.eq.s32.totalorder %v425, 2
    %v431 = vsel %vm430, %v421, %v429
    %v432 = vld [vmem:[%s7] sm:$0x1]
    %v434 = vlaneseq
    %v435 = vshrl.u32 %v434, 7
    %v436 = vsub.s32 0, %v435
    %v437 = vrot.slane %v432, %v436
    %v439 = vadd.f32 %v431, %v437
    %440 = vst [vmem:[#allocation12] sm:$0xff] %v439
    // Predicated region
    $region54: #{tpu_custom_call.1} parent=1 // pred_check
      _
    $region55: #{tpu_custom_call.1} parent=1 // pred_check_branch
      %442 = sbr.rel (0) target = $region57
    $region56: #{tpu_custom_call.1} parent=1 // pred_region
      %s444 = ssub.s32 128, 128
      %445 = vsyncadd [#allocation5], %s444
      %s447 = sshll.u32 [#allocation12], 4
      %s448 = int_to_ptr.vmem [resolvable:$true] %s447
      %450 = dma.vmem_to_hbm [thread:$0]  %s448, 128, %s8, [#allocation5]
    $region57: #{tpu_custom_call.1} parent=1 // pred_fallthru
      _
    // Predicated region
    $region58: #{tpu_custom_call.1} parent=1 // pred_check
      _
    $region59: #{tpu_custom_call.1} parent=1 // pred_check_branch
      %452 = sbr.rel (0) target = $region61
    $region60: #{tpu_custom_call.1} parent=1 // pred_region
      %453 = dma.done [#allocation5], 128
    $region61: #{tpu_custom_call.1} parent=1 // pred_fallthru
      _
    %454 = vsyncpa [#allocation4], 1
    %455 = vsyncpa [#allocation7], 1
    %456 = vsyncpa [#allocation10], 1
    %457 = vsyncpa [#allocation5], 1

</llo_original>
